<compile_context>
chip_gen: v5e
topology: v5e:2x2
jax: 0.10.0
libtpu: 0.0.40
codegen_flags: <defaults>
</compile_context>

<pallas_src>
import jax
import jax.numpy as jnp
from jax.experimental import pallas as pl
from jax.experimental.pallas import tpu as pltpu


def _round_up(a: int, b: int) -> int:
    return (a + b - 1) // b * b


def _vmem_capacity_bytes() -> int:
    """Physical per-core VMEM; conservative fallback if the query fails."""
    try:
        info = pltpu.get_tpu_info()
        cap = getattr(info, "vmem_capacity_bytes", None)
        if cap:
            return int(cap)
    except Exception:
        pass
    return 64 * 1024 * 1024  # v7x per-TC size — safe lower bound everywhere


def _patch_merging_kernel(x_ref, gamma_ref, beta_ref, w_ref, o_ref):
    """Fused LayerNorm(2C) + Linear(2C -> 2C, no bias) on one (TM, 2C) row tile.

    x_ref:     (TM, 2C)  merged frame-pair rows
    gamma_ref: (1, 2C)   LayerNorm weight (f32)
    beta_ref:  (1, 2C)   LayerNorm bias   (f32)
    w_ref:     (2C, 2C)  reduction weight, already transposed to (in, out), bf16
    o_ref:     (TM, 2C)
    """
    x = x_ref[...].astype(jnp.float32)

    # LayerNorm over the last dim (eps matches torch.nn.LayerNorm default).
    mean = jnp.mean(x, axis=-1, keepdims=True)
    centered = x - mean
    var = jnp.mean(centered * centered, axis=-1, keepdims=True)
    xn = centered * jax.lax.rsqrt(var + 1e-5)
    xn = xn * gamma_ref[...] + beta_ref[...]

    # MXU matmul in the weight's (bf16) dtype with f32 accumulation.  The
    # weight was transposed once in the wrapper, so this is a plain (1,0)
    # contraction — no per-tile transpose.
    y = jnp.dot(xn.astype(w_ref.dtype), w_ref[...],
                preferred_element_type=jnp.float32)

    o_ref[...] = y.astype(o_ref.dtype)


def patch_merging(x, gamma, beta, weight, mask=None):
    """x: (B, F, C). weight: (2C, 2C) in PyTorch (out, in) layout.
    Returns ((B, F//2, 2C), mask') matching the PyTorch module semantics."""
    B, F, C = x.shape
    assert F % 2 == 0, f"Number of frames ({F}) must be even."
    C2 = 2 * C
    M = B * (F // 2)

    # even/odd split + channel concat == reshape (B, F//2, 2, C) -> (M, 2C)
    x_merged = x.reshape(M, C2)

    x_bytes = jnp.dtype(x.dtype).itemsize
    # Feed the MXU bf16 (or the weight's own dtype if it is already <= 16-bit);
    # accumulation stays f32 inside the kernel.
    w_dtype = weight.dtype if jnp.dtype(weight.dtype).itemsize <= 2 else jnp.bfloat16
    w_bytes = jnp.dtype(w_dtype).itemsize
    # One-time host-side transpose of the tiny (2C, 2C) weight to (in, out).
    w_t = weight.T.astype(w_dtype)

    sub = 8 if x_bytes >= 4 else 16  # sublane granularity (f32 / bf16 packing)

    # ---- VMEM budget & row-tile size ---------------------------------------
    vmem_cap = _vmem_capacity_bytes()
    vmem_ceiling = int(0.75 * vmem_cap)          # leave compiler/scratch headroom
    const_bytes = C2 * C2 * w_bytes + 2 * 4 * C2 + (1 << 20)   # single-buffered consts
    # per-row: 2x input buffers + 2x output buffers + ~3 f32 temporaries
    per_row = 2 * C2 * x_bytes + 2 * C2 * x_bytes + 3 * C2 * 4
    tile_budget = max(2 << 20, vmem_ceiling - const_bytes - (2 << 20))
    max_rows = max(sub, (tile_budget // per_row) // sub * sub)

    tm = min(4096, max_rows, _round_up(M, sub))
    if tm >= 256:
        tm = (tm // 256) * 256                   # clean MXU / DMA granularity

    # Guarantee >= 2 (ideally >= 8) grid steps when M is large enough, so the
    # "parallel" row axis spans both TensorCores on v7x (and pipelines well).
    for steps, min_rows in ((8, 1024), (2, 256)):
        if M >= steps * min_rows:
            tm = min(tm, max(min_rows, _round_up(pl.cdiv(M, steps), 256)))

    grid = (pl.cdiv(M, tm),)                     # partial edge block OK (no pad)

    vmem_need = (2 * tm * C2 * x_bytes           # x double buffers
                 + 2 * tm * C2 * x_bytes         # out double buffers
                 + 3 * tm * C2 * 4               # f32 temporaries
                 + const_bytes
                 + (2 << 20))                    # headroom
    vmem_limit = int(min(vmem_ceiling, max(vmem_need, 16 * 1024 * 1024)))

    cost = pl.CostEstimate(
        flops=2 * M * C2 * C2 + 8 * M * C2,      # matmul + LN elementwise
        transcendentals=M,                       # one rsqrt per row
        bytes_accessed=2 * M * C2 * x_bytes + C2 * C2 * w_bytes + 2 * C2 * 4)

    out = pl.pallas_call(
        _patch_merging_kernel,
        out_shape=jax.ShapeDtypeStruct((M, C2), x.dtype),
        grid=grid,
        in_specs=[
            # pipelined row tiles (default double-buffering)
            pl.BlockSpec((tm, C2), lambda i: (i, 0)),
            # grid-invariant operands: single-buffered to save VMEM (v7x)
            pl.BlockSpec((1, C2), lambda i: (0, 0), pipeline_mode=pl.Buffered(1)),
            pl.BlockSpec((1, C2), lambda i: (0, 0), pipeline_mode=pl.Buffered(1)),
            pl.BlockSpec((C2, C2), lambda i: (0, 0), pipeline_mode=pl.Buffered(1)),
        ],
        out_specs=pl.BlockSpec((tm, C2), lambda i: (i, 0)),
        compiler_params=pltpu.CompilerParams(
            dimension_semantics=("parallel",),   # rows independent -> both TCs on v7x
            vmem_limit_bytes=vmem_limit),
        cost_estimate=cost,
    )(x_merged,
      gamma.astype(jnp.float32).reshape(1, C2),
      beta.astype(jnp.float32).reshape(1, C2),
      w_t)

    out = out.reshape(B, F // 2, C2)

    if mask is not None:
        # glue: pair-wise max over the sequence dim, same as the PyTorch branch
        bsz = mask.shape[0]
        seq_len = mask.shape[-1]
        assert seq_len % 2 == 0, "Sequence length must be divisible by 2 for patch merging"
        mask = mask.reshape(bsz, 1, 1, seq_len // 2, 2).max(axis=-1)

    return out, mask


if __name__ == "__main__":
    # Small deterministic setup: batch=2, frames=8, dim=64 -> 2*dim = 128
    # (2C = 128 keeps the output store lane-dense).
    B, F, C = 2, 8, 64
    key = jax.random.PRNGKey(0)
    kx, kw, kg, kb, km = jax.random.split(key, 5)

    x = jax.random.normal(kx, (B, F, C), dtype=jnp.float32)
    # Linear(2C, 2C, bias=False) weight in PyTorch layout: (out=2C, in=2C)
    weight = jax.random.normal(kw, (2 * C, 2 * C), dtype=jnp.float32) * (1.0 / (2 * C) ** 0.5)
    # LayerNorm(2C) affine params
    gamma = jnp.ones((2 * C,), dtype=jnp.float32) + 0.01 * jax.random.normal(kg, (2 * C,))
    beta = 0.01 * jax.random.normal(kb, (2 * C,), dtype=jnp.float32)
    # optional mask: (B, 1, 1, seq_len)
    mask = (jax.random.uniform(km, (B, 1, 1, F)) > 0.5).astype(jnp.float32)

    out, new_mask = patch_merging(x, gamma, beta, weight, mask=mask)
    jax.block_until_ready(out)
    jax.block_until_ready(new_mask)

    # --- references -----------------------------------------------------------
    x_even = x[:, 0::2, :]
    x_odd = x[:, 1::2, :]
    xm = jnp.concatenate([x_even, x_odd], axis=-1)           # (B, F//2, 2C)
    mu = xm.mean(-1, keepdims=True)
    var = ((xm - mu) ** 2).mean(-1, keepdims=True)
    xn = (xm - mu) * jax.lax.rsqrt(var + 1e-5) * gamma + beta

    # (a) mirror of the kernel's dtype policy (bf16 MXU operands, f32 accumulate)
    ref_mirror = jnp.dot(xn.astype(jnp.bfloat16).reshape(-1, 2 * C),
                         weight.T.astype(jnp.bfloat16),
                         preferred_element_type=jnp.float32).reshape(B, F // 2, 2 * C)
    ref_mirror = ref_mirror.astype(x.dtype)
    # (b) full-f32 PyTorch-style reference (looser tolerance due to bf16 MXU operands)
    ref_f32 = xn @ weight.T
    ref_mask = mask.reshape(B, 1, 1, F // 2, 2).max(axis=-1)

    assert out.shape == (B, F // 2, 2 * C)
    assert jnp.allclose(out, ref_mirror, atol=1e-3, rtol=1e-3)
    assert jnp.allclose(out, ref_f32, atol=2e-2, rtol=2e-2)
    assert new_mask.shape == (B, 1, 1, F // 2)
    assert jnp.allclose(new_mask, ref_mask)

    print("KERNEL_OK")
</pallas_src>

<mosaic_0001>
module attributes {stable_mosaic.version = 11 : i64} {
  func.func @_patch_merging_kernel(%arg0: i32, %arg1: memref<8x128xf32, #tpu.memory_space<vmem>>, %arg2: memref<1x128xf32, #tpu.memory_space<vmem>>, %arg3: memref<1x128xf32, #tpu.memory_space<vmem>>, %arg4: memref<128x128xbf16, #tpu.memory_space<vmem>>, %arg5: memref<8x128xf32, #tpu.memory_space<vmem>>) attributes {dimension_semantics = [#tpu.dimension_semantics<parallel>], iteration_bounds = array<i64: 1>, scalar_prefetch = 0 : i64, scratch_operands = 0 : i64, tpu.core_type = #tpu.core_type<tc>, window_params = [{transform_indices = @transform_0, window_bounds = array<i64: 8, 128>}, {pipeline_mode = #tpu.pipeline_mode<synchronous>, transform_indices = @transform_1, window_bounds = array<i64: 1, 128>}, {pipeline_mode = #tpu.pipeline_mode<synchronous>, transform_indices = @transform_2, window_bounds = array<i64: 1, 128>}, {pipeline_mode = #tpu.pipeline_mode<synchronous>, transform_indices = @transform_3, window_bounds = array<i64: 128, 128>}, {transform_indices = @transform_4, window_bounds = array<i64: 8, 128>}]} {
    %c0 = arith.constant 0 : index
    %c0_0 = arith.constant 0 : index
    %0 = vector.load %arg1[%c0, %c0_0] : memref<8x128xf32, #tpu.memory_space<vmem>>, vector<8x128xf32>
    %cst = arith.constant dense<0.000000e+00> : vector<8xf32>
    %1 = vector.multi_reduction <add>, %0, %cst [1] : vector<8x128xf32> to vector<8xf32>
    %2 = vector.shape_cast %1 : vector<8xf32> to vector<8x1xf32>
    %cst_1 = arith.constant 1.280000e+02 : f32
    %3 = vector.broadcast %cst_1 : f32 to vector<8x1xf32>
    %4 = arith.divf %2, %3 : vector<8x1xf32>
    %5 = vector.broadcast %4 : vector<8x1xf32> to vector<8x128xf32>
    %6 = arith.subf %0, %5 : vector<8x128xf32>
    %7 = arith.mulf %6, %6 : vector<8x128xf32>
    %cst_2 = arith.constant dense<0.000000e+00> : vector<8xf32>
    %8 = vector.multi_reduction <add>, %7, %cst_2 [1] : vector<8x128xf32> to vector<8xf32>
    %9 = vector.shape_cast %8 : vector<8xf32> to vector<8x1xf32>
    %cst_3 = arith.constant 1.280000e+02 : f32
    %10 = vector.broadcast %cst_3 : f32 to vector<8x1xf32>
    %11 = arith.divf %9, %10 : vector<8x1xf32>
    %cst_4 = arith.constant 9.99999974E-6 : f32
    %12 = vector.broadcast %cst_4 : f32 to vector<8x1xf32>
    %13 = arith.addf %11, %12 : vector<8x1xf32>
    %14 = math.rsqrt %13 : vector<8x1xf32>
    %15 = vector.broadcast %14 : vector<8x1xf32> to vector<8x128xf32>
    %16 = arith.mulf %6, %15 : vector<8x128xf32>
    %c0_5 = arith.constant 0 : index
    %c0_6 = arith.constant 0 : index
    %17 = vector.load %arg2[%c0_5, %c0_6] : memref<1x128xf32, #tpu.memory_space<vmem>>, vector<1x128xf32>
    %18 = vector.broadcast %17 : vector<1x128xf32> to vector<8x128xf32>
    %19 = arith.mulf %16, %18 : vector<8x128xf32>
    %c0_7 = arith.constant 0 : index
    %c0_8 = arith.constant 0 : index
    %20 = vector.load %arg3[%c0_7, %c0_8] : memref<1x128xf32, #tpu.memory_space<vmem>>, vector<1x128xf32>
    %21 = vector.broadcast %20 : vector<1x128xf32> to vector<8x128xf32>
    %22 = arith.addf %19, %21 : vector<8x128xf32>
    %23 = arith.truncf %22 : vector<8x128xf32> to vector<8x128xbf16>
    %c0_9 = arith.constant 0 : index
    %c0_10 = arith.constant 0 : index
    %24 = vector.load %arg4[%c0_9, %c0_10] : memref<128x128xbf16, #tpu.memory_space<vmem>>, vector<128x128xbf16>
    %cst_11 = arith.constant dense<0.000000e+00> : vector<8x128xf32>
    %25 = tpu.matmul %23, %24, %cst_11 {dimension_numbers = #tpu.dot_dimension_numbers<[1], [0], [0], [1], [0, 0, 1, 1], [], []>} : vector<8x128xbf16>, vector<128x128xbf16>, vector<8x128xf32> -> vector<8x128xf32>
    %c0_12 = arith.constant 0 : index
    %c0_13 = arith.constant 0 : index
    %26 = vector.load %arg5[%c0_12, %c0_13] : memref<8x128xf32, #tpu.memory_space<vmem>>, vector<8x128xf32>
    tpu.vector_store %arg5[%c0_12, %c0_13], %25 {strides = array<i32>} : memref<8x128xf32, #tpu.memory_space<vmem>>, vector<8x128xf32>,
    return
  }
  func.func @transform_0(%arg0: i32) -> (i32, i32) {
    %c0_i32 = arith.constant 0 : i32
    %c0_i32_0 = arith.constant 0 : i32
    return %arg0, %c0_i32 : i32, i32
  }
  func.func @transform_1(%arg0: i32) -> (i32, i32) {
    %c0_i32 = arith.constant 0 : i32
    %c0_i32_0 = arith.constant 0 : i32
    %c0_i32_1 = arith.constant 0 : i32
    return %c0_i32, %c0_i32_0 : i32, i32
  }
  func.func @transform_2(%arg0: i32) -> (i32, i32) {
    %c0_i32 = arith.constant 0 : i32
    %c0_i32_0 = arith.constant 0 : i32
    %c0_i32_1 = arith.constant 0 : i32
    return %c0_i32, %c0_i32_0 : i32, i32
  }
  func.func @transform_3(%arg0: i32) -> (i32, i32) {
    %c0_i32 = arith.constant 0 : i32
    %c0_i32_0 = arith.constant 0 : i32
    %c0_i32_1 = arith.constant 0 : i32
    return %c0_i32, %c0_i32_0 : i32, i32
  }
  func.func @transform_4(%arg0: i32) -> (i32, i32) {
    %c0_i32 = arith.constant 0 : i32
    %c0_i32_0 = arith.constant 0 : i32
    return %arg0, %c0_i32 : i32, i32
  }
}

</mosaic_0001>

<llo_original>
// kernel: tpu_custom_call.1
$region0: #{tpu_custom_call.1}
  #allocation0 [shape = 'u32[]', space=smem, size = 0x4, offset = 0x4, fixed_abs, tag = 'smem constant byte address 0x4 - core index']
  #allocation1 [shape = 'u32[72,128]{1,0:T(1,128)}', space=vmem, size = 0x9000, scoped, tag = 'internal scratch']
  %s0 = inlined_call_operand.hbm [shape: f32[8,128], index: 0, kind: input, shape index: {}]
  %s1 = inlined_call_operand.hbm [shape: f32[1,128], index: 1, kind: input, shape index: {}]
  %s2 = inlined_call_operand.vmem [shape: f32[1,128], index: 2, kind: input, shape index: {}]
  %s3 = inlined_call_operand.hbm [shape: bf16[128,128], index: 3, kind: input, shape index: {}]
  %s4 = inlined_call_operand.hbm [shape: f32[8,128], index: 4, kind: output, shape index: {}]
  %s5 = sld [smem:[#allocation0]]
  $region38: #{tpu_custom_call.1} parent=0
    _
  %s7 = ssub.s32 1, %s5
  %s8 = scalar_select 0, %s7, %s5
  $region1: #{tpu_custom_call.1} parent=0
    #allocation2 [shape = 'u8[4096]{0}', space=vmem, size = 0x1000, scoped, tag = 'input window, operand 0, single buffered']
    #allocation3 [shape = 's32[1]{0}', space=sflag, size = 0x4, scoped, tag = 'scoped memory for tpu_custom_call.1']
    #allocation4 [shape = 's32[1]{0}', space=sflag, size = 0x4, scoped, tag = 'scoped memory for tpu_custom_call.1']
    #allocation5 [shape = 'u8[512]{0}', space=vmem, size = 0x400, scoped, tag = 'input window, operand 1, single buffered']
    #allocation6 [shape = 's32[1]{0}', space=sflag, size = 0x4, scoped, tag = 'scoped memory for tpu_custom_call.1']
    #allocation7 [shape = 'u8[32768]{0}', space=vmem, size = 0x8000, scoped, tag = 'input window, operand 3, single buffered']
    #allocation8 [shape = 'u8[4096]{0}', space=vmem, size = 0x1000, scoped, tag = 'output window, operand 0, single buffered']
    %9 = vsyncpa [#allocation3], 0
    %10 = vsyncpa [#allocation6], 0
    %11 = vsyncpa [#allocation4], 0
    // Predicated region
    $region2: #{tpu_custom_call.1} parent=1 // pred_check
      _
    $region3: #{tpu_custom_call.1} parent=1 // pred_check_branch
      %13 = sbr.rel (0) target = $region5
    $region4: #{tpu_custom_call.1} parent=1 // pred_region
      %15 = vsyncadd [#allocation3], 0
      %s17 = sshll.u32 %s0, 4
      %s18 = int_to_ptr.hbm [resolvable:$true] %s17
      %s19 = sshll.u32 [#allocation2], 4
      %s20 = int_to_ptr.vmem [resolvable:$true] %s19
      %22 = dma.hbm_to_vmem [thread:$0]  %s18, 128, %s20, [#allocation3]
    $region5: #{tpu_custom_call.1} parent=1 // pred_fallthru
      _
    // Predicated region
    $region6: #{tpu_custom_call.1} parent=1 // pred_check
      _
    $region7: #{tpu_custom_call.1} parent=1 // pred_check_branch
      %24 = sbr.rel (0) target = $region9
    $region8: #{tpu_custom_call.1} parent=1 // pred_region
      %26 = vsyncadd [#allocation6], 0
      %s28 = sshll.u32 %s1, 4
      %s29 = int_to_ptr.hbm [resolvable:$true] %s28
      %s30 = sshll.u32 [#allocation5], 4
      %s31 = int_to_ptr.vmem [resolvable:$true] %s30
      %33 = dma.hbm_to_vmem [thread:$0]  %s29, 16, %s31, [#allocation6]
    $region9: #{tpu_custom_call.1} parent=1 // pred_fallthru
      _
    // Predicated region
    $region10: #{tpu_custom_call.1} parent=1 // pred_check
      _
    $region11: #{tpu_custom_call.1} parent=1 // pred_check_branch
      %35 = sbr.rel (0) target = $region13
    $region12: #{tpu_custom_call.1} parent=1 // pred_region
      _
    $region13: #{tpu_custom_call.1} parent=1 // pred_fallthru
      _
    // Predicated region
    $region14: #{tpu_custom_call.1} parent=1 // pred_check
      _
    $region15: #{tpu_custom_call.1} parent=1 // pred_check_branch
      %37 = sbr.rel (0) target = $region17
    $region16: #{tpu_custom_call.1} parent=1 // pred_region
      %39 = vsyncadd [#allocation6], 0
      %s40 = sshll.u32 %s3, 4
      %s41 = int_to_ptr.hbm [resolvable:$true] %s40
      %s42 = sshll.u32 [#allocation7], 4
      %s43 = int_to_ptr.vmem [resolvable:$true] %s42
      %48 = dma.hbm_to_vmem [thread:$0]  %s41, 1024, %s43, [#allocation6], 64, 64, 4
    $region17: #{tpu_custom_call.1} parent=1 // pred_fallthru
      _
    // Predicated region
    $region18: #{tpu_custom_call.1} parent=1 // pred_check
      _
    $region19: #{tpu_custom_call.1} parent=1 // pred_check_branch
      %50 = sbr.rel (0) target = $region21
    $region20: #{tpu_custom_call.1} parent=1 // pred_region
      %52 = dma.done [#allocation3], 128
    $region21: #{tpu_custom_call.1} parent=1 // pred_fallthru
      _
    // Predicated region
    $region22: #{tpu_custom_call.1} parent=1 // pred_check
      _
    $region23: #{tpu_custom_call.1} parent=1 // pred_check_branch
      %54 = sbr.rel (0) target = $region25
    $region24: #{tpu_custom_call.1} parent=1 // pred_region
      %56 = dma.done [#allocation6], 16
    $region25: #{tpu_custom_call.1} parent=1 // pred_fallthru
      _
    // Predicated region
    $region26: #{tpu_custom_call.1} parent=1 // pred_check
      _
    $region27: #{tpu_custom_call.1} parent=1 // pred_check_branch
      %58 = sbr.rel (0) target = $region29
    $region28: #{tpu_custom_call.1} parent=1 // pred_region
      %60 = dma.done [#allocation6], 1024
    $region29: #{tpu_custom_call.1} parent=1 // pred_fallthru
      _
    %v61 = vld [vmem:[#allocation2] sm:$0xff]
    %62 = vadd.xlane.f32.xlu0 %v61
    %v63 = vpop.xlane.xlu0 %62
    %v64 = vrcp.pop 128.0
    %v65 = vmul.f32 128.0, %v64
    %v66 = vsub.f32 1.0, %v65
    %v67 = vmul.f32 %v64, %v66
    %v68 = vadd.f32 %v64, %v67
    %vm69 = vweird.f32 %v64
    %v70 = vsel %vm69, %v64, %v68
    %v71 = vmul.f32 %v63, %v70
    %v72 = vsub.f32 %v61, %v71
    %v73 = vmul.f32 %v72, %v72
    %74 = vadd.xlane.f32.xlu0 %v73
    %v75 = vpop.xlane.xlu0 %74
    %v76 = vmul.f32 %v75, %v70
    %v77 = vadd.f32 %v76, 1e-05
    %v78 = vrsqrt.pop %v77
    %v79 = vmul.f32 %v78, %v77
    %v80 = vmul.f32 %v79, %v78
    %v81 = vmul.f32 0.5, %v80
    %v82 = vsub.f32 1.5, %v81
    %v83 = vmul.f32 %v78, %v82
    %vm84 = vweird.f32 %v77
    %vm85 = vweird.f32 %v78
    %vm86 = vmor %vm84, %vm85
    %v87 = vsel %vm86, %v78, %v83
    %v88 = vmul.f32 %v72, %v87
    %v89 = vld [vmem:[#allocation5] sm:$0x1]
    %v91 = vperm.slane %v89, 0
    %v93 = vmul.f32 %v88, %v91
    %v94 = vld [vmem:[%s2] sm:$0x1]
    %v96 = vperm.slane %v94, 0
    %v98 = vadd.f32 %v93, %v96
    %v99 = vpack.c.bf16 %v98, %v98
    %v100 = vld [vmem:[#allocation7] sm:$0xf]
    %v101 = vld [vmem:[#allocation7 + $0x4] sm:$0xf]
    %v102 = vld [vmem:[#allocation7 + $0x8] sm:$0xf]
    %v103 = vld [vmem:[#allocation7 + $0xc] sm:$0xf]
    %v104 = vld [vmem:[#allocation7 + $0x10] sm:$0xf]
    %v105 = vld [vmem:[#allocation7 + $0x14] sm:$0xf]
    %v106 = vld [vmem:[#allocation7 + $0x18] sm:$0xf]
    %v107 = vld [vmem:[#allocation7 + $0x1c] sm:$0xf]
    %v108 = vld [vmem:[#allocation7 + $0x20] sm:$0xf]
    %v109 = vld [vmem:[#allocation7 + $0x24] sm:$0xf]
    %v110 = vld [vmem:[#allocation7 + $0x28] sm:$0xf]
    %v111 = vld [vmem:[#allocation7 + $0x2c] sm:$0xf]
    %v112 = vld [vmem:[#allocation7 + $0x30] sm:$0xf]
    %v113 = vld [vmem:[#allocation7 + $0x34] sm:$0xf]
    %v114 = vld [vmem:[#allocation7 + $0x38] sm:$0xf]
    %v115 = vld [vmem:[#allocation7 + $0x3c] sm:$0xf]
    %v132 = vunpack.c.l.b16 %v100
    %v133 = vunpack.c.l.b16 %v101
    %v134 = vunpack.c.l.b16 %v102
    %v135 = vunpack.c.l.b16 %v103
    %v136 = vunpack.c.l.b16 %v104
    %v137 = vunpack.c.l.b16 %v105
    %v138 = vunpack.c.l.b16 %v106
    %v139 = vunpack.c.l.b16 %v107
    %v140 = vunpack.c.l.b16 %v108
    %v141 = vunpack.c.l.b16 %v109
    %v142 = vunpack.c.l.b16 %v110
    %v143 = vunpack.c.l.b16 %v111
    %v144 = vunpack.c.l.b16 %v112
    %v145 = vunpack.c.l.b16 %v113
    %v146 = vunpack.c.l.b16 %v114
    %v147 = vunpack.c.l.b16 %v115
    %v148 = vpack.c.b16 %v133, %v132
    %v149 = vpack.c.b16 %v135, %v134
    %v150 = vpack.c.b16 %v137, %v136
    %v151 = vpack.c.b16 %v139, %v138
    %v152 = vpack.c.b16 %v141, %v140
    %v153 = vpack.c.b16 %v143, %v142
    %v154 = vpack.c.b16 %v145, %v144
    %v155 = vpack.c.b16 %v147, %v146
    %164 = vmatpush.bf16.msra.mxu0 %v155
    %165 = vmatpush.bf16.msra.mxu0 %v154
    %166 = vmatpush.bf16.msra.mxu0 %v153
    %167 = vmatpush.bf16.msra.mxu0 %v152
    %168 = vmatpush.bf16.msra.mxu0 %v151
    %169 = vmatpush.bf16.msra.mxu0 %v150
    %170 = vmatpush.bf16.msra.mxu0 %v149
    %171 = vmatpush.bf16.msra.mxu0 %v148
    %172 = vmatmul.bf16.gmra.mxu0 %v99
    %v173 = vpop.f32.mrf.mxu0
    %v174 = vadd.f32 0.0, %v173
    %v175 = vpop.f32.mrf.mxu0
    %176 = vdwg.mxu0
    %177 = vst [vmem:[#allocation8] sm:$0xff] %v174
    // Predicated region
    $region30: #{tpu_custom_call.1} parent=1 // pred_check
      _
    $region31: #{tpu_custom_call.1} parent=1 // pred_check_branch
      %179 = sbr.rel (0) target = $region33
    $region32: #{tpu_custom_call.1} parent=1 // pred_region
      %181 = vsyncadd [#allocation4], 0
      %s183 = sshll.u32 [#allocation8], 4
      %s184 = int_to_ptr.vmem [resolvable:$true] %s183
      %s185 = sshll.u32 %s4, 4
      %s186 = int_to_ptr.hbm [resolvable:$true] %s185
      %188 = dma.vmem_to_hbm [thread:$0]  %s184, 128, %s186, [#allocation4]
    $region33: #{tpu_custom_call.1} parent=1 // pred_fallthru
      _
    // Predicated region
    $region34: #{tpu_custom_call.1} parent=1 // pred_check
      _
    $region35: #{tpu_custom_call.1} parent=1 // pred_check_branch
      %190 = sbr.rel (0) target = $region37
    $region36: #{tpu_custom_call.1} parent=1 // pred_region
      %192 = dma.done [#allocation4], 128
    $region37: #{tpu_custom_call.1} parent=1 // pred_fallthru
      _
    %193 = vsyncpa [#allocation3], 1
    %194 = vsyncpa [#allocation6], 1
    %195 = vsyncpa [#allocation4], 1

</llo_original>
